<compile_context>
chip_gen: v6e
topology: v6e:2x2x1
jax: 0.10.0
libtpu: 0.0.40
codegen_flags: <defaults>
</compile_context>

<pallas_src>
import math

import jax
import jax.numpy as jnp
from jax.experimental import pallas as pl
from jax.experimental.pallas import tpu as pltpu  # noqa: F401  (TPU backend)

# ----- model / problem sizes (small, consistent with MEMO.__init__) -----
B = 8                 # batch
OBS_DIM = 8           # obs_dim == embedding_dim
OUT_DIM = 4           # action dim
LATENT_MODES = 8      # num_embeddings
ENC_H = 32            # encoder_hidden[-1]
DEC_H = 32            # decoder_hidden[0]
ACT_H = 32            # actor_hidden[0]
KL_BETA = 1.0         # forward() default
_LOG_2PI = math.log(2.0 * math.pi)

LANES = 128
IN_ROWS = 3 * B       # X rows, DX rows, A rows stacked along sublanes

# ----- packed-parameter slab layout: (name, rows, cols), 8-aligned row offsets -----
_PARAM_LAYOUT = [
    ('ew1',  OBS_DIM,      OBS_DIM // 2),
    ('eb1',  1,            OBS_DIM // 2),
    ('ew2',  OBS_DIM // 2, OBS_DIM),
    ('eb2',  1,            OBS_DIM),
    ('pw',   OBS_DIM,      OBS_DIM),
    ('pb',   1,            OBS_DIM),
    ('emb',  LATENT_MODES, OBS_DIM),
    ('demb', 1,            LATENT_MODES),   # precomputed sum(emb**2, axis=1)
    ('qw',   OBS_DIM,      ENC_H),
    ('qb',   1,            ENC_H),
    ('dw1',  ENC_H,        DEC_H),
    ('db1',  1,            DEC_H),
    ('dw2',  DEC_H,        OBS_DIM),
    ('db2',  1,            OBS_DIM),
    ('aw1x', OBS_DIM,      ACT_H),
    ('aw1p', LATENT_MODES, ACT_H),
    ('ab1',  1,            ACT_H),
    ('aw2',  ACT_H,        OUT_DIM),
    ('ab2',  1,            OUT_DIM),
    ('itv',  1,            OUT_DIM),         # 0.5 * exp(-2 * log_std)
    ('lpc',  1,            OUT_DIM),         # -log_std - 0.5 * log(2*pi)
]

ROW_OFF = {}
PSHAPE = {}
_r = 0
for _name, _rows, _cols in _PARAM_LAYOUT:
    ROW_OFF[_name] = _r
    PSHAPE[_name] = (_rows, _cols)
    _r += -(-_rows // 8) * 8          # round rows up to a multiple of 8
PARAM_ROWS = _r                        # 240


def _mean_all(x):
    """mean over a 2-D tile, kept as a (1,1) array (lane-then-sublane reduce)."""
    s = jnp.sum(x, axis=1, keepdims=True)
    s = jnp.sum(s, axis=0, keepdims=True)
    return s / float(x.shape[0] * x.shape[1])


# =============================== kernel ====================================
def memo_kernel(in_ref, p_ref, out_ref):
    f32 = jnp.float32

    def W(name):
        r0 = ROW_OFF[name]
        rows, cols = PSHAPE[name]
        return p_ref[r0:r0 + rows, 0:cols]

    # packed inputs (sublane-stacked, 8-aligned row slices)
    x = in_ref[0:B, 0:OBS_DIM]
    dx = in_ref[B:2 * B, 0:OBS_DIM]
    a = in_ref[2 * B:3 * B, 0:OUT_DIM]

    # --- VQEncoder: Linear -> tanh -> Linear -> tanh ---
    h = jnp.tanh(jnp.dot(dx, W('ew1'), preferred_element_type=f32) + W('eb1'))
    enc = jnp.tanh(jnp.dot(h, W('ew2'), preferred_element_type=f32) + W('eb2'))

    # --- prenet ---
    enc_out = jnp.dot(enc, W('pw'), preferred_element_type=f32) + W('pb')       # (B, D)

    # --- VectorQuantizer: squared distances, argmin, codebook lookup ---
    emb = W('emb')                                                               # (K, D)
    d_in = jnp.sum(enc_out * enc_out, axis=1, keepdims=True)                     # (B, 1)
    cross = jnp.dot(enc_out, emb.T, preferred_element_type=f32)                  # (B, K)
    dist = d_in + W('demb') - 2.0 * cross                                        # (B, K)

    k = LATENT_MODES
    col = jax.lax.broadcasted_iota(jnp.int32, dist.shape, 1)                     # (B, K)
    min_d = jnp.min(dist, axis=1, keepdims=True)
    proposal = jnp.min(jnp.where(dist == min_d, col, jnp.int32(k)),
                       axis=1, keepdims=True)                                    # (B, 1) int32
    onehot = (col == proposal).astype(f32)                                       # (B, K)
    quantized = jnp.dot(onehot, emb, preferred_element_type=f32)                 # (B, D)

    # --- straight-through estimator: forward value equals `quantized` ---
    # TODO(synk): .detach() only changes gradients; forward value is exact here.
    post = jnp.dot(quantized, W('qw'), preferred_element_type=f32) + W('qb')

    # --- VQDecoder: tanh -> Linear -> tanh -> Linear ---
    d1 = jnp.tanh(jnp.dot(jnp.tanh(post), W('dw1'),
                          preferred_element_type=f32) + W('db1'))
    recon = jnp.dot(d1, W('dw2'), preferred_element_type=f32) + W('db2')         # (B, D)

    # --- VQCriterion ---
    recon_loss = _mean_all((dx - recon) ** 2)                                    # (1,1)
    vq_loss = _mean_all((enc_out - quantized) ** 2)                              # (1,1)
    total = recon_loss + vq_loss + KL_BETA * vq_loss                             # (1,1)

    # --- actor on concat([state, distances]); concat expressed as split matmul ---
    h1 = jnp.tanh(jnp.dot(x, W('aw1x'), preferred_element_type=f32)
                  + jnp.dot(dist, W('aw1p'), preferred_element_type=f32)
                  + W('ab1'))
    mu = jnp.dot(h1, W('aw2'), preferred_element_type=f32) + W('ab2')            # (B, OUT)

    # Normal log-prob with hoisted constants:  -(a-mu)^2 * 1/(2 var) - log_std - 0.5 log(2pi)
    log_prob = -((a - mu) ** 2) * W('itv') + W('lpc')                            # (B, OUT)
    e = jnp.exp(log_prob)                                                        # computed once
    loss_pi = jnp.sum(1.0 / (e + 0.1), axis=-1, keepdims=True)                   # (B, 1)
    loss = loss_pi * total                                                       # (B, 1)

    # --- single lane-dense output tile: lanes 0..3 hold loss / loss_pi / label / total ---
    ocol = jax.lax.broadcasted_iota(jnp.int32, (B, LANES), 1)
    out = jnp.where(ocol == 0, loss, 0.0)
    out = jnp.where(ocol == 1, loss_pi, out)
    out = jnp.where(ocol == 2, proposal.astype(f32), out)   # labels are exact small ints
    out = jnp.where(ocol == 3, total, out)
    out_ref[...] = out


# =============================== wrappers ===================================
def pack_params(params):
    """Pack all parameters (plus hoisted derived constants) into one (240,128) slab."""
    vals = dict(params)
    vals['demb'] = jnp.sum(params['emb'] ** 2, axis=1)[None, :]       # (1, K)
    log_std = params['log_std']                                       # (1, OUT)
    vals['itv'] = 0.5 * jnp.exp(-2.0 * log_std)
    vals['lpc'] = -log_std - 0.5 * _LOG_2PI
    slab = jnp.zeros((PARAM_ROWS, LANES), jnp.float32)
    for name, rows, cols in _PARAM_LAYOUT:
        v = jnp.asarray(vals[name], jnp.float32).reshape(rows, cols)
        slab = slab.at[ROW_OFF[name]:ROW_OFF[name] + rows, 0:cols].set(v)
    return slab


def _pack_inputs(X, DX, A):
    xin = jnp.zeros((IN_ROWS, LANES), jnp.float32)
    xin = xin.at[0:B, 0:OBS_DIM].set(X)
    xin = xin.at[B:2 * B, 0:OBS_DIM].set(DX)
    xin = xin.at[2 * B:3 * B, 0:OUT_DIM].set(A)
    return xin


@jax.jit
def memo_forward(param_slab, X, DX, A):
    xin = _pack_inputs(X, DX, A)
    out = pl.pallas_call(
        memo_kernel,
        out_shape=jax.ShapeDtypeStruct((B, LANES), jnp.float32),
    )(xin, param_slab)
    loss = out[:, 0]
    loss_pi = out[:, 1]
    labels = out[:, 2].astype(jnp.int32)
    total = out[0, 3]
    # (loss, loss_pi, X, vq_latent_labels, vq_total_loss) — same as MEMO.forward
    return loss, loss_pi, X, labels, total


# ----- deterministic parameter init (synthetic, torch-Linear-like uniform) -----
def init_params(key):
    ks = jax.random.split(key, 10)

    def lin(k, fi, fo):
        kw, kb = jax.random.split(k)
        bound = 1.0 / math.sqrt(fi)
        w = jax.random.uniform(kw, (fi, fo), jnp.float32, -bound, bound)
        b = jax.random.uniform(kb, (1, fo), jnp.float32, -bound, bound)
        return w, b

    p = {}
    p['ew1'], p['eb1'] = lin(ks[0], OBS_DIM, OBS_DIM // 2)
    p['ew2'], p['eb2'] = lin(ks[1], OBS_DIM // 2, OBS_DIM)
    p['pw'],  p['pb'] = lin(ks[2], OBS_DIM, OBS_DIM)
    scale = 1.0 / LATENT_MODES
    p['emb'] = jax.random.uniform(ks[3], (LATENT_MODES, OBS_DIM), jnp.float32, -scale, scale)
    p['qw'],  p['qb'] = lin(ks[4], OBS_DIM, ENC_H)
    p['dw1'], p['db1'] = lin(ks[5], ENC_H, DEC_H)
    p['dw2'], p['db2'] = lin(ks[6], DEC_H, OBS_DIM)
    aw1, ab1 = lin(ks[7], OBS_DIM + LATENT_MODES, ACT_H)
    p['aw1x'], p['aw1p'], p['ab1'] = aw1[:OBS_DIM], aw1[OBS_DIM:], ab1
    p['aw2'], p['ab2'] = lin(ks[8], ACT_H, OUT_DIM)
    p['log_std'] = jnp.full((1, OUT_DIM), -0.5, jnp.float32)
    return p


# ----- pure-JAX reference (mirrors the PyTorch forward) -----
def memo_reference(params, X, DX, A):
    def lin(x, w, b):
        return x @ w + b

    h = jnp.tanh(lin(DX, params['ew1'], params['eb1']))
    enc = jnp.tanh(lin(h, params['ew2'], params['eb2']))
    enc_out = lin(enc, params['pw'], params['pb'])
    emb = params['emb']
    dist = (jnp.sum(enc_out ** 2, axis=1, keepdims=True)
            + jnp.sum(emb ** 2, axis=1)[None, :]
            - 2.0 * enc_out @ emb.T)
    proposal = jnp.argmin(dist, axis=-1)
    quantized = emb[proposal]
    post = lin(quantized, params['qw'], params['qb'])
    d1 = jnp.tanh(lin(jnp.tanh(post), params['dw1'], params['db1']))
    recon = lin(d1, params['dw2'], params['db2'])
    recon_loss = jnp.mean((DX - recon) ** 2)
    vq_loss = jnp.mean((enc_out - quantized) ** 2)
    total = recon_loss + vq_loss + KL_BETA * vq_loss
    concat = jnp.concatenate([X, dist], axis=-1)
    aw1 = jnp.concatenate([params['aw1x'], params['aw1p']], axis=0)
    h1 = jnp.tanh(lin(concat, aw1, params['ab1']))
    mu = lin(h1, params['aw2'], params['ab2'])
    log_std = params['log_std']
    var = jnp.exp(2.0 * log_std)
    log_prob = -((A - mu) ** 2) / (2.0 * var) - log_std - 0.5 * _LOG_2PI
    loss_pi = jnp.sum(1.0 / (jnp.exp(log_prob) + 0.1), axis=-1)
    loss = loss_pi * total
    return loss, loss_pi, X, proposal, total


if __name__ == "__main__":
    key = jax.random.PRNGKey(0)
    kp, kx, kdx, ka = jax.random.split(key, 4)

    params = init_params(kp)
    X = jax.random.normal(kx, (B, OBS_DIM), jnp.float32)
    DX = jax.random.normal(kdx, (B, OBS_DIM), jnp.float32)
    A = jax.random.normal(ka, (B, OUT_DIM), jnp.float32)

    param_slab = pack_params(params)          # one-time host-side packing
    out = memo_forward(param_slab, X, DX, A)
    out = jax.block_until_ready(out)
    loss, loss_pi, x_out, labels, total = out

    ref = memo_reference(params, X, DX, A)
    assert jnp.allclose(loss, ref[0], rtol=1e-4, atol=1e-4)
    assert jnp.allclose(loss_pi, ref[1], rtol=1e-4, atol=1e-4)
    assert jnp.array_equal(labels, ref[3].astype(jnp.int32))
    assert jnp.allclose(total, ref[4], rtol=1e-4, atol=1e-4)
    assert jnp.allclose(x_out, X)

    print("KERNEL_OK")
</pallas_src>

<mosaic_0001>
module attributes {stable_mosaic.version = 11 : i64} {
  func.func @memo_kernel(%arg0: memref<24x128xf32, #tpu.memory_space<vmem>>, %arg1: memref<240x128xf32, #tpu.memory_space<vmem>>, %arg2: memref<8x128xf32, #tpu.memory_space<vmem>>) attributes {dimension_semantics = [], scalar_prefetch = 0 : i64, scratch_operands = 0 : i64, tpu.core_type = #tpu.core_type<tc>} {
    %c0 = arith.constant 0 : index
    %c0_0 = arith.constant 0 : index
    %0 = vector.load %arg0[%c0, %c0_0] : memref<24x128xf32, #tpu.memory_space<vmem>>, vector<8x8xf32>
    %c8 = arith.constant 8 : index
    %c0_1 = arith.constant 0 : index
    %1 = vector.load %arg0[%c8, %c0_1] : memref<24x128xf32, #tpu.memory_space<vmem>>, vector<8x8xf32>
    %c16 = arith.constant 16 : index
    %c0_2 = arith.constant 0 : index
    %2 = vector.load %arg0[%c16, %c0_2] : memref<24x128xf32, #tpu.memory_space<vmem>>, vector<8x4xf32>
    %c0_3 = arith.constant 0 : index
    %c0_4 = arith.constant 0 : index
    %3 = vector.load %arg1[%c0_3, %c0_4] : memref<240x128xf32, #tpu.memory_space<vmem>>, vector<8x4xf32>
    %cst = arith.constant dense<0.000000e+00> : vector<8x4xf32>
    %4 = tpu.matmul %1, %3, %cst {dimension_numbers = #tpu.dot_dimension_numbers<[1], [0], [0], [1], [0, 0, 1, 1], [], []>} : vector<8x8xf32>, vector<8x4xf32>, vector<8x4xf32> -> vector<8x4xf32>
    %c8_5 = arith.constant 8 : index
    %c0_6 = arith.constant 0 : index
    %5 = vector.load %arg1[%c8_5, %c0_6] : memref<240x128xf32, #tpu.memory_space<vmem>>, vector<1x4xf32>
    %6 = vector.broadcast %5 : vector<1x4xf32> to vector<8x4xf32>
    %7 = arith.addf %4, %6 : vector<8x4xf32>
    %8 = math.tanh %7 : vector<8x4xf32>
    %c16_7 = arith.constant 16 : index
    %c0_8 = arith.constant 0 : index
    %9 = vector.load %arg1[%c16_7, %c0_8] : memref<240x128xf32, #tpu.memory_space<vmem>>, vector<4x8xf32>
    %cst_9 = arith.constant dense<0.000000e+00> : vector<8x8xf32>
    %10 = tpu.matmul %8, %9, %cst_9 {dimension_numbers = #tpu.dot_dimension_numbers<[1], [0], [0], [1], [0, 0, 1, 1], [], []>} : vector<8x4xf32>, vector<4x8xf32>, vector<8x8xf32> -> vector<8x8xf32>
    %c24 = arith.constant 24 : index
    %c0_10 = arith.constant 0 : index
    %11 = vector.load %arg1[%c24, %c0_10] : memref<240x128xf32, #tpu.memory_space<vmem>>, vector<1x8xf32>
    %12 = vector.broadcast %11 : vector<1x8xf32> to vector<8x8xf32>
    %13 = arith.addf %10, %12 : vector<8x8xf32>
    %14 = math.tanh %13 : vector<8x8xf32>
    %c32 = arith.constant 32 : index
    %c0_11 = arith.constant 0 : index
    %15 = vector.load %arg1[%c32, %c0_11] : memref<240x128xf32, #tpu.memory_space<vmem>>, vector<8x8xf32>
    %cst_12 = arith.constant dense<0.000000e+00> : vector<8x8xf32>
    %16 = tpu.matmul %14, %15, %cst_12 {dimension_numbers = #tpu.dot_dimension_numbers<[1], [0], [0], [1], [0, 0, 1, 1], [], []>} : vector<8x8xf32>, vector<8x8xf32>, vector<8x8xf32> -> vector<8x8xf32>
    %c40 = arith.constant 40 : index
    %c0_13 = arith.constant 0 : index
    %17 = vector.load %arg1[%c40, %c0_13] : memref<240x128xf32, #tpu.memory_space<vmem>>, vector<1x8xf32>
    %18 = vector.broadcast %17 : vector<1x8xf32> to vector<8x8xf32>
    %19 = arith.addf %16, %18 : vector<8x8xf32>
    %c48 = arith.constant 48 : index
    %c0_14 = arith.constant 0 : index
    %20 = vector.load %arg1[%c48, %c0_14] : memref<240x128xf32, #tpu.memory_space<vmem>>, vector<8x8xf32>
    %21 = arith.mulf %19, %19 : vector<8x8xf32>
    %cst_15 = arith.constant dense<0.000000e+00> : vector<8xf32>
    %22 = vector.multi_reduction <add>, %21, %cst_15 [1] : vector<8x8xf32> to vector<8xf32>
    %23 = vector.shape_cast %22 : vector<8xf32> to vector<8x1xf32>
    %24 = tpu.transpose %20, [1, 0] : vector<8x8xf32> -> vector<8x8xf32>
    %cst_16 = arith.constant dense<0.000000e+00> : vector<8x8xf32>
    %25 = tpu.matmul %19, %24, %cst_16 {dimension_numbers = #tpu.dot_dimension_numbers<[1], [0], [0], [1], [0, 0, 1, 1], [], []>} : vector<8x8xf32>, vector<8x8xf32>, vector<8x8xf32> -> vector<8x8xf32>
    %c56 = arith.constant 56 : index
    %c0_17 = arith.constant 0 : index
    %26 = vector.load %arg1[%c56, %c0_17] : memref<240x128xf32, #tpu.memory_space<vmem>>, vector<1x8xf32>
    %27 = vector.broadcast %23 : vector<8x1xf32> to vector<8x8xf32>
    %28 = vector.broadcast %26 : vector<1x8xf32> to vector<8x8xf32>
    %29 = arith.addf %27, %28 : vector<8x8xf32>
    %cst_18 = arith.constant 2.000000e+00 : f32
    %30 = vector.broadcast %cst_18 : f32 to vector<8x8xf32>
    %31 = arith.mulf %30, %25 : vector<8x8xf32>
    %32 = arith.subf %29, %31 : vector<8x8xf32>
    %33 = tpu.iota {dimensions = array<i32: 1>} : vector<8x8xi32>
    %cst_19 = arith.constant dense<0x7F800000> : vector<8xf32>
    %34 = vector.multi_reduction <minimumf>, %32, %cst_19 [1] : vector<8x8xf32> to vector<8xf32>
    %35 = vector.shape_cast %34 : vector<8xf32> to vector<8x1xf32>
    %36 = vector.broadcast %35 : vector<8x1xf32> to vector<8x8xf32>
    %37 = arith.cmpf oeq, %32, %36 : vector<8x8xf32>
    %c8_i32 = arith.constant 8 : i32
    %38 = vector.broadcast %c8_i32 : i32 to vector<8x8xi32>
    %39 = arith.select %37, %33, %38 : vector<8x8xi1>, vector<8x8xi32>
    %cst_20 = arith.constant dense<2147483647> : vector<8xi32>
    %40 = vector.multi_reduction <minsi>, %39, %cst_20 [1] : vector<8x8xi32> to vector<8xi32>
    %41 = vector.shape_cast %40 : vector<8xi32> to vector<8x1xi32>
    %42 = vector.broadcast %41 : vector<8x1xi32> to vector<8x8xi32>
    %43 = arith.cmpi eq, %33, %42 : vector<8x8xi32>
    %44 = arith.extui %43 : vector<8x8xi1> to vector<8x8xi32>
    %45 = arith.sitofp %44 : vector<8x8xi32> to vector<8x8xf32>
    %cst_21 = arith.constant dense<0.000000e+00> : vector<8x8xf32>
    %46 = tpu.matmul %45, %20, %cst_21 {dimension_numbers = #tpu.dot_dimension_numbers<[1], [0], [0], [1], [0, 0, 1, 1], [], []>} : vector<8x8xf32>, vector<8x8xf32>, vector<8x8xf32> -> vector<8x8xf32>
    %c64 = arith.constant 64 : index
    %c0_22 = arith.constant 0 : index
    %47 = vector.load %arg1[%c64, %c0_22] : memref<240x128xf32, #tpu.memory_space<vmem>>, vector<8x32xf32>
    %cst_23 = arith.constant dense<0.000000e+00> : vector<8x32xf32>
    %48 = tpu.matmul %46, %47, %cst_23 {dimension_numbers = #tpu.dot_dimension_numbers<[1], [0], [0], [1], [0, 0, 1, 1], [], []>} : vector<8x8xf32>, vector<8x32xf32>, vector<8x32xf32> -> vector<8x32xf32>
    %c72 = arith.constant 72 : index
    %c0_24 = arith.constant 0 : index
    %49 = vector.load %arg1[%c72, %c0_24] : memref<240x128xf32, #tpu.memory_space<vmem>>, vector<1x32xf32>
    %50 = vector.broadcast %49 : vector<1x32xf32> to vector<8x32xf32>
    %51 = arith.addf %48, %50 : vector<8x32xf32>
    %52 = math.tanh %51 : vector<8x32xf32>
    %c80 = arith.constant 80 : index
    %c0_25 = arith.constant 0 : index
    %53 = vector.load %arg1[%c80, %c0_25] : memref<240x128xf32, #tpu.memory_space<vmem>>, vector<32x32xf32>
    %cst_26 = arith.constant dense<0.000000e+00> : vector<8x32xf32>
    %54 = tpu.matmul %52, %53, %cst_26 {dimension_numbers = #tpu.dot_dimension_numbers<[1], [0], [0], [1], [0, 0, 1, 1], [], []>} : vector<8x32xf32>, vector<32x32xf32>, vector<8x32xf32> -> vector<8x32xf32>
    %c112 = arith.constant 112 : index
    %c0_27 = arith.constant 0 : index
    %55 = vector.load %arg1[%c112, %c0_27] : memref<240x128xf32, #tpu.memory_space<vmem>>, vector<1x32xf32>
    %56 = vector.broadcast %55 : vector<1x32xf32> to vector<8x32xf32>
    %57 = arith.addf %54, %56 : vector<8x32xf32>
    %58 = math.tanh %57 : vector<8x32xf32>
    %c120 = arith.constant 120 : index
    %c0_28 = arith.constant 0 : index
    %59 = vector.load %arg1[%c120, %c0_28] : memref<240x128xf32, #tpu.memory_space<vmem>>, vector<32x8xf32>
    %cst_29 = arith.constant dense<0.000000e+00> : vector<8x8xf32>
    %60 = tpu.matmul %58, %59, %cst_29 {dimension_numbers = #tpu.dot_dimension_numbers<[1], [0], [0], [1], [0, 0, 1, 1], [], []>} : vector<8x32xf32>, vector<32x8xf32>, vector<8x8xf32> -> vector<8x8xf32>
    %c152 = arith.constant 152 : index
    %c0_30 = arith.constant 0 : index
    %61 = vector.load %arg1[%c152, %c0_30] : memref<240x128xf32, #tpu.memory_space<vmem>>, vector<1x8xf32>
    %62 = vector.broadcast %61 : vector<1x8xf32> to vector<8x8xf32>
    %63 = arith.addf %60, %62 : vector<8x8xf32>
    %64 = arith.subf %1, %63 : vector<8x8xf32>
    %65 = arith.mulf %64, %64 : vector<8x8xf32>
    %cst_31 = arith.constant dense<0.000000e+00> : vector<8xf32>
    %66 = vector.multi_reduction <add>, %65, %cst_31 [1] : vector<8x8xf32> to vector<8xf32>
    %67 = vector.shape_cast %66 : vector<8xf32> to vector<8x1xf32>
    %cst_32 = arith.constant dense<0.000000e+00> : vector<1xf32>
    %68 = vector.multi_reduction <add>, %67, %cst_32 [0] : vector<8x1xf32> to vector<1xf32>
    %69 = vector.shape_cast %68 : vector<1xf32> to vector<1x1xf32>
    %cst_33 = arith.constant 6.400000e+01 : f32
    %70 = vector.broadcast %cst_33 : f32 to vector<1x1xf32>
    %71 = arith.divf %69, %70 : vector<1x1xf32>
    %72 = arith.subf %19, %46 : vector<8x8xf32>
    %73 = arith.mulf %72, %72 : vector<8x8xf32>
    %cst_34 = arith.constant dense<0.000000e+00> : vector<8xf32>
    %74 = vector.multi_reduction <add>, %73, %cst_34 [1] : vector<8x8xf32> to vector<8xf32>
    %75 = vector.shape_cast %74 : vector<8xf32> to vector<8x1xf32>
    %cst_35 = arith.constant dense<0.000000e+00> : vector<1xf32>
    %76 = vector.multi_reduction <add>, %75, %cst_35 [0] : vector<8x1xf32> to vector<1xf32>
    %77 = vector.shape_cast %76 : vector<1xf32> to vector<1x1xf32>
    %cst_36 = arith.constant 6.400000e+01 : f32
    %78 = vector.broadcast %cst_36 : f32 to vector<1x1xf32>
    %79 = arith.divf %77, %78 : vector<1x1xf32>
    %80 = arith.addf %71, %79 : vector<1x1xf32>
    %cst_37 = arith.constant 1.000000e+00 : f32
    %81 = vector.broadcast %cst_37 : f32 to vector<1x1xf32>
    %82 = arith.mulf %81, %79 : vector<1x1xf32>
    %83 = arith.addf %80, %82 : vector<1x1xf32>
    %c160 = arith.constant 160 : index
    %c0_38 = arith.constant 0 : index
    %84 = vector.load %arg1[%c160, %c0_38] : memref<240x128xf32, #tpu.memory_space<vmem>>, vector<8x32xf32>
    %cst_39 = arith.constant dense<0.000000e+00> : vector<8x32xf32>
    %85 = tpu.matmul %0, %84, %cst_39 {dimension_numbers = #tpu.dot_dimension_numbers<[1], [0], [0], [1], [0, 0, 1, 1], [], []>} : vector<8x8xf32>, vector<8x32xf32>, vector<8x32xf32> -> vector<8x32xf32>
    %c168 = arith.constant 168 : index
    %c0_40 = arith.constant 0 : index
    %86 = vector.load %arg1[%c168, %c0_40] : memref<240x128xf32, #tpu.memory_space<vmem>>, vector<8x32xf32>
    %cst_41 = arith.constant dense<0.000000e+00> : vector<8x32xf32>
    %87 = tpu.matmul %32, %86, %cst_41 {dimension_numbers = #tpu.dot_dimension_numbers<[1], [0], [0], [1], [0, 0, 1, 1], [], []>} : vector<8x8xf32>, vector<8x32xf32>, vector<8x32xf32> -> vector<8x32xf32>
    %88 = arith.addf %85, %87 : vector<8x32xf32>
    %c176 = arith.constant 176 : index
    %c0_42 = arith.constant 0 : index
    %89 = vector.load %arg1[%c176, %c0_42] : memref<240x128xf32, #tpu.memory_space<vmem>>, vector<1x32xf32>
    %90 = vector.broadcast %89 : vector<1x32xf32> to vector<8x32xf32>
    %91 = arith.addf %88, %90 : vector<8x32xf32>
    %92 = math.tanh %91 : vector<8x32xf32>
    %c184 = arith.constant 184 : index
    %c0_43 = arith.constant 0 : index
    %93 = vector.load %arg1[%c184, %c0_43] : memref<240x128xf32, #tpu.memory_space<vmem>>, vector<32x4xf32>
    %cst_44 = arith.constant dense<0.000000e+00> : vector<8x4xf32>
    %94 = tpu.matmul %92, %93, %cst_44 {dimension_numbers = #tpu.dot_dimension_numbers<[1], [0], [0], [1], [0, 0, 1, 1], [], []>} : vector<8x32xf32>, vector<32x4xf32>, vector<8x4xf32> -> vector<8x4xf32>
    %c216 = arith.constant 216 : index
    %c0_45 = arith.constant 0 : index
    %95 = vector.load %arg1[%c216, %c0_45] : memref<240x128xf32, #tpu.memory_space<vmem>>, vector<1x4xf32>
    %96 = vector.broadcast %95 : vector<1x4xf32> to vector<8x4xf32>
    %97 = arith.addf %94, %96 : vector<8x4xf32>
    %98 = arith.subf %2, %97 : vector<8x4xf32>
    %99 = arith.mulf %98, %98 : vector<8x4xf32>
    %cst_46 = arith.constant 0.000000e+00 : f32
    %100 = vector.broadcast %cst_46 : f32 to vector<8x4xf32>
    %101 = arith.subf %100, %99 : vector<8x4xf32>
    %c224 = arith.constant 224 : index
    %c0_47 = arith.constant 0 : index
    %102 = vector.load %arg1[%c224, %c0_47] : memref<240x128xf32, #tpu.memory_space<vmem>>, vector<1x4xf32>
    %103 = vector.broadcast %102 : vector<1x4xf32> to vector<8x4xf32>
    %104 = arith.mulf %101, %103 : vector<8x4xf32>
    %c232 = arith.constant 232 : index
    %c0_48 = arith.constant 0 : index
    %105 = vector.load %arg1[%c232, %c0_48] : memref<240x128xf32, #tpu.memory_space<vmem>>, vector<1x4xf32>
    %106 = vector.broadcast %105 : vector<1x4xf32> to vector<8x4xf32>
    %107 = arith.addf %104, %106 : vector<8x4xf32>
    %108 = math.exp %107 : vector<8x4xf32>
    %cst_49 = arith.constant 1.000000e-01 : f32
    %109 = vector.broadcast %cst_49 : f32 to vector<8x4xf32>
    %110 = arith.addf %108, %109 : vector<8x4xf32>
    %cst_50 = arith.constant 1.000000e+00 : f32
    %111 = vector.broadcast %cst_50 : f32 to vector<8x4xf32>
    %112 = arith.divf %111, %110 : vector<8x4xf32>
    %cst_51 = arith.constant dense<0.000000e+00> : vector<8xf32>
    %113 = vector.multi_reduction <add>, %112, %cst_51 [1] : vector<8x4xf32> to vector<8xf32>
    %114 = vector.shape_cast %113 : vector<8xf32> to vector<8x1xf32>
    %115 = vector.broadcast %83 : vector<1x1xf32> to vector<8x1xf32>
    %116 = arith.mulf %114, %115 : vector<8x1xf32>
    %117 = tpu.iota {dimensions = array<i32: 1>} : vector<8x128xi32>
    %c0_i32 = arith.constant 0 : i32
    %118 = vector.broadcast %c0_i32 : i32 to vector<8x128xi32>
    %119 = arith.cmpi eq, %117, %118 : vector<8x128xi32>
    %cst_52 = arith.constant 0.000000e+00 : f32
    %120 = vector.shape_cast %116 : vector<8x1xf32> to vector<8x1xf32>
    %121 = vector.broadcast %120 : vector<8x1xf32> to vector<8x128xf32>
    %122 = vector.broadcast %cst_52 : f32 to vector<8x128xf32>
    %123 = arith.select %119, %121, %122 : vector<8x128xi1>, vector<8x128xf32>
    %c1_i32 = arith.constant 1 : i32
    %124 = vector.broadcast %c1_i32 : i32 to vector<8x128xi32>
    %125 = arith.cmpi eq, %117, %124 : vector<8x128xi32>
    %126 = vector.shape_cast %114 : vector<8x1xf32> to vector<8x1xf32>
    %127 = vector.broadcast %126 : vector<8x1xf32> to vector<8x128xf32>
    %128 = arith.select %125, %127, %123 : vector<8x128xi1>, vector<8x128xf32>
    %c2_i32 = arith.constant 2 : i32
    %129 = vector.broadcast %c2_i32 : i32 to vector<8x128xi32>
    %130 = arith.cmpi eq, %117, %129 : vector<8x128xi32>
    %131 = arith.sitofp %41 : vector<8x1xi32> to vector<8x1xf32>
    %132 = vector.shape_cast %131 : vector<8x1xf32> to vector<8x1xf32>
    %133 = vector.broadcast %132 : vector<8x1xf32> to vector<8x128xf32>
    %134 = arith.select %130, %133, %128 : vector<8x128xi1>, vector<8x128xf32>
    %c3_i32 = arith.constant 3 : i32
    %135 = vector.broadcast %c3_i32 : i32 to vector<8x128xi32>
    %136 = arith.cmpi eq, %117, %135 : vector<8x128xi32>
    %137 = vector.shape_cast %83 : vector<1x1xf32> to vector<1x1xf32>
    %138 = vector.broadcast %137 : vector<1x1xf32> to vector<8x128xf32>
    %139 = arith.select %136, %138, %134 : vector<8x128xi1>, vector<8x128xf32>
    %c0_53 = arith.constant 0 : index
    %c0_54 = arith.constant 0 : index
    %140 = vector.load %arg2[%c0_53, %c0_54] : memref<8x128xf32, #tpu.memory_space<vmem>>, vector<8x128xf32>
    tpu.vector_store %arg2[%c0_53, %c0_54], %139 {strides = array<i32>} : memref<8x128xf32, #tpu.memory_space<vmem>>, vector<8x128xf32>,
    return
  }
}

</mosaic_0001>

<llo_original>
// kernel: memo_forward.1
$region0: #{memo_forward.1}
  #allocation0 [shape = 'u32[]', space=smem, size = 0x4, offset = 0x4, fixed_abs, tag = 'smem constant byte address 0x4 - core index']
  #allocation1 [shape = 'u32[144,128]{1,0:T(1,128)}', space=vmem, size = 0x12000, scoped, tag = 'internal scratch']
  %s0 = inlined_call_operand.vmem [shape: f32[24,128], index: 0, kind: input, shape index: {}]
  %s1 = inlined_call_operand.hbm [shape: f32[240,128], index: 1, kind: input, shape index: {}]
  %s2 = inlined_call_operand.vmem [shape: f32[8,128], index: 2, kind: output, shape index: {}]
  %s3 = sld [smem:[#allocation0]]
  $region22: #{memo_forward.1} parent=0
    _
  %s5 = ssub.s32 1, %s3
  %s6 = scalar_select 0, %s5, %s3
  $region1: #{memo_forward.1} parent=0
    #allocation2 [shape = 'u8[122880]{0}', space=vmem, size = 0x1e000, scoped, tag = 'input window, operand 1, single buffered']
    #allocation3 [shape = 's32[1]{0}', space=sflag, size = 0x4, scoped, tag = 'scoped memory for memo_forward.1']
    %7 = vsyncpa [#allocation3], 0
    // Predicated region
    $region2: #{memo_forward.1} parent=1 // pred_check
      _
    $region3: #{memo_forward.1} parent=1 // pred_check_branch
      %9 = sbr.rel (0) target = $region5
    $region4: #{memo_forward.1} parent=1 // pred_region
      _
    $region5: #{memo_forward.1} parent=1 // pred_fallthru
      _
    // Predicated region
    $region6: #{memo_forward.1} parent=1 // pred_check
      _
    $region7: #{memo_forward.1} parent=1 // pred_check_branch
      %11 = sbr.rel (0) target = $region9
    $region8: #{memo_forward.1} parent=1 // pred_region
      %s13 = ssub.s32 3840, 3840
      %14 = vsyncadd [#allocation3], %s13
      %s15 = sshll.u32 [#allocation2], 4
      %s16 = int_to_ptr.vmem [resolvable:$true] %s15
      %21 = dma.hbm_to_vmem [thread:$0]  %s1, 3840, %s16, [#allocation3], 128, 128, 8
    $region9: #{memo_forward.1} parent=1 // pred_fallthru
      _
    // Predicated region
    $region10: #{memo_forward.1} parent=1 // pred_check
      _
    $region11: #{memo_forward.1} parent=1 // pred_check_branch
      %23 = sbr.rel (0) target = $region13
    $region12: #{memo_forward.1} parent=1 // pred_region
      %24 = dma.done [#allocation3], 3840
    $region13: #{memo_forward.1} parent=1 // pred_fallthru
      _
    %v25 = vld [vmem:[%s0] sm:$0xff]
    %v26 = vld [vmem:[%s0 + $0x8] sm:$0xff]
    %v27 = vld [vmem:[%s0 + $0x10] sm:$0xff]
    %v28 = vld [vmem:[#allocation2] sm:$0xff]
    %v29 = vld [vmem:[#allocation2 + $0x8] sm:$0x1]
    %v30 = vlaneseq
    %v31 = vshrl.u32 %v30, 7
    %v32 = vsub.s32 0, %v31
    %v33 = vrot.slane %v29, %v32
    %vm34 = vcmask 64512
    %v36 = vsel %vm34, %v26, 0
    %38 = vmatprep.subr.mxu0 0.0
    %39 = vmatpush1.msra.mxu0 0.0
    %40 = vmatprep.subr.mxu0 0.0
    %41 = vmatpush1.msra.mxu0 0.0
    %42 = vmatprep.subr.mxu0 0.0
    %43 = vmatpush1.msra.mxu0 0.0
    %44 = vmatprep.subr.mxu0 0.0
    %45 = vmatpush1.msra.mxu0 0.0
    %46 = vmatprep.subr.mxu0 0.0
    %47 = vmatpush1.msra.mxu0 0.0
    %48 = vmatprep.subr.mxu0 0.0
    %49 = vmatpush1.msra.mxu0 0.0
    %50 = vmatprep.subr.mxu0 0.0
    %51 = vmatpush1.msra.mxu0 0.0
    %52 = vmatprep.subr.mxu0 0.0
    %53 = vmatpush1.msra.mxu0 0.0
    %54 = vmatprep.subr.mxu0 0.0
    %55 = vmatpush1.msra.mxu0 0.0
    %56 = vmatprep.subr.mxu0 0.0
    %57 = vmatpush1.msra.mxu0 0.0
    %58 = vmatprep.subr.mxu0 0.0
    %59 = vmatpush1.msra.mxu0 0.0
    %60 = vmatprep.subr.mxu0 0.0
    %61 = vmatpush1.msra.mxu0 0.0
    %62 = vmatprep.subr.mxu0 0.0
    %63 = vmatpush1.msra.mxu0 0.0
    %64 = vmatprep.subr.mxu0 0.0
    %65 = vmatpush1.msra.mxu0 0.0
    %66 = vmatprep.subr.mxu0 0.0
    %67 = vmatpush1.msra.mxu0 0.0
    %68 = vmatprep.subr.mxu0 0.0
    %69 = vmatpush1.msra.mxu0 %v28
    %70 = vmatprep.subr.mxu0 0.0
    %71 = vmatpush2.msra.mxu0 0.0
    %72 = vmatprep.subr.mxu0 0.0
    %73 = vmatpush2.msra.mxu0 0.0
    %74 = vmatprep.subr.mxu0 0.0
    %75 = vmatpush2.msra.mxu0 0.0
    %76 = vmatprep.subr.mxu0 0.0
    %77 = vmatpush2.msra.mxu0 0.0
    %78 = vmatprep.subr.mxu0 0.0
    %79 = vmatpush2.msra.mxu0 0.0
    %80 = vmatprep.subr.mxu0 0.0
    %81 = vmatpush2.msra.mxu0 0.0
    %82 = vmatprep.subr.mxu0 0.0
    %83 = vmatpush2.msra.mxu0 0.0
    %84 = vmatprep.subr.mxu0 0.0
    %85 = vmatpush2.msra.mxu0 0.0
    %86 = vmatprep.subr.mxu0 0.0
    %87 = vmatpush2.msra.mxu0 0.0
    %88 = vmatprep.subr.mxu0 0.0
    %89 = vmatpush2.msra.mxu0 0.0
    %90 = vmatprep.subr.mxu0 0.0
    %91 = vmatpush2.msra.mxu0 0.0
    %92 = vmatprep.subr.mxu0 0.0
    %93 = vmatpush2.msra.mxu0 0.0
    %94 = vmatprep.subr.mxu0 0.0
    %95 = vmatpush2.msra.mxu0 0.0
    %96 = vmatprep.subr.mxu0 0.0
    %97 = vmatpush2.msra.mxu0 0.0
    %98 = vmatprep.subr.mxu0 0.0
    %99 = vmatpush2.msra.mxu0 0.0
    %100 = vmatprep.subr.mxu0 0.0
    %101 = vmatpush2.msra.mxu0 0.0
    %102 = vmatprep.mubr.f32.mxu0 0.0
    %103 = vmatmul.mubr.f32.gmra.mxu0 %v36
    %v104 = vpop.f32.mrf.mxu0
    %v105 = vadd.f32 %v33, %v104
    %v106 = vpop.f32.mrf.mxu0
    %107 = vdwg.mxu0
    %v108 = vtanh.pop %v105
    %v109 = vld [vmem:[#allocation2 + $0x10] sm:$0xf]
    %v110 = vld [vmem:[#allocation2 + $0x18] sm:$0x1]
    %v111 = vlaneseq
    %v112 = vshrl.u32 %v111, 7
    %v113 = vsub.s32 0, %v112
    %v114 = vrot.slane %v110, %v113
    %vm115 = vcmask 31744
    %v117 = vsel %vm115, %v108, 0
    %vm119 = vcmask 1043456
    %v121 = vsel %vm119, %v109, 0
    %123 = vmatprep.subr.mxu0 0.0
    %124 = vmatpush1.msra.mxu0 0.0
    %125 = vmatprep.subr.mxu0 0.0
    %126 = vmatpush1.msra.mxu0 0.0
    %127 = vmatprep.subr.mxu0 0.0
    %128 = vmatpush1.msra.mxu0 0.0
    %129 = vmatprep.subr.mxu0 0.0
    %130 = vmatpush1.msra.mxu0 0.0
    %131 = vmatprep.subr.mxu0 0.0
    %132 = vmatpush1.msra.mxu0 0.0
    %133 = vmatprep.subr.mxu0 0.0
    %134 = vmatpush1.msra.mxu0 0.0
    %135 = vmatprep.subr.mxu0 0.0
    %136 = vmatpush1.msra.mxu0 0.0
    %137 = vmatprep.subr.mxu0 0.0
    %138 = vmatpush1.msra.mxu0 0.0
    %139 = vmatprep.subr.mxu0 0.0
    %140 = vmatpush1.msra.mxu0 0.0
    %141 = vmatprep.subr.mxu0 0.0
    %142 = vmatpush1.msra.mxu0 0.0
    %143 = vmatprep.subr.mxu0 0.0
    %144 = vmatpush1.msra.mxu0 0.0
    %145 = vmatprep.subr.mxu0 0.0
    %146 = vmatpush1.msra.mxu0 0.0
    %147 = vmatprep.subr.mxu0 0.0
    %148 = vmatpush1.msra.mxu0 0.0
    %149 = vmatprep.subr.mxu0 0.0
    %150 = vmatpush1.msra.mxu0 0.0
    %151 = vmatprep.subr.mxu0 0.0
    %152 = vmatpush1.msra.mxu0 0.0
    %153 = vmatprep.subr.mxu0 0.0
    %154 = vmatpush1.msra.mxu0 %v121
    %155 = vmatprep.subr.mxu0 0.0
    %156 = vmatpush2.msra.mxu0 0.0
    %157 = vmatprep.subr.mxu0 0.0
    %158 = vmatpush2.msra.mxu0 0.0
    %159 = vmatprep.subr.mxu0 0.0
    %160 = vmatpush2.msra.mxu0 0.0
    %161 = vmatprep.subr.mxu0 0.0
    %162 = vmatpush2.msra.mxu0 0.0
    %163 = vmatprep.subr.mxu0 0.0
    %164 = vmatpush2.msra.mxu0 0.0
    %165 = vmatprep.subr.mxu0 0.0
    %166 = vmatpush2.msra.mxu0 0.0
    %167 = vmatprep.subr.mxu0 0.0
    %168 = vmatpush2.msra.mxu0 0.0
    %169 = vmatprep.subr.mxu0 0.0
    %170 = vmatpush2.msra.mxu0 0.0
    %171 = vmatprep.subr.mxu0 0.0
    %172 = vmatpush2.msra.mxu0 0.0
    %173 = vmatprep.subr.mxu0 0.0
    %174 = vmatpush2.msra.mxu0 0.0
    %175 = vmatprep.subr.mxu0 0.0
    %176 = vmatpush2.msra.mxu0 0.0
    %177 = vmatprep.subr.mxu0 0.0
    %178 = vmatpush2.msra.mxu0 0.0
    %179 = vmatprep.subr.mxu0 0.0
    %180 = vmatpush2.msra.mxu0 0.0
    %181 = vmatprep.subr.mxu0 0.0
    %182 = vmatpush2.msra.mxu0 0.0
    %183 = vmatprep.subr.mxu0 0.0
    %184 = vmatpush2.msra.mxu0 0.0
    %185 = vmatprep.subr.mxu0 0.0
    %186 = vmatpush2.msra.mxu0 0.0
    %187 = vmatprep.mubr.f32.mxu0 0.0
    %188 = vmatmul.mubr.f32.gmra.mxu0 %v117
    %v189 = vpop.f32.mrf.mxu0
    %v190 = vadd.f32 %v114, %v189
    %v191 = vpop.f32.mrf.mxu0
    %192 = vdwg.mxu0
    %v193 = vtanh.pop %v190
    %v194 = vld [vmem:[#allocation2 + $0x20] sm:$0xff]
    %v195 = vld [vmem:[#allocation2 + $0x28] sm:$0x1]
    %v196 = vlaneseq
    %v197 = vshrl.u32 %v196, 7
    %v198 = vsub.s32 0, %v197
    %v199 = vrot.slane %v195, %v198
    %v201 = vsel %vm34, %v193, 0
    %203 = vmatprep.subr.mxu0 0.0
    %204 = vmatpush1.msra.mxu0 0.0
    %205 = vmatprep.subr.mxu0 0.0
    %206 = vmatpush1.msra.mxu0 0.0
    %207 = vmatprep.subr.mxu0 0.0
    %208 = vmatpush1.msra.mxu0 0.0
    %209 = vmatprep.subr.mxu0 0.0
    %210 = vmatpush1.msra.mxu0 0.0
    %211 = vmatprep.subr.mxu0 0.0
    %212 = vmatpush1.msra.mxu0 0.0
    %213 = vmatprep.subr.mxu0 0.0
    %214 = vmatpush1.msra.mxu0 0.0
    %215 = vmatprep.subr.mxu0 0.0
    %216 = vmatpush1.msra.mxu0 0.0
    %217 = vmatprep.subr.mxu0 0.0
    %218 = vmatpush1.msra.mxu0 0.0
    %219 = vmatprep.subr.mxu0 0.0
    %220 = vmatpush1.msra.mxu0 0.0
    %221 = vmatprep.subr.mxu0 0.0
    %222 = vmatpush1.msra.mxu0 0.0
    %223 = vmatprep.subr.mxu0 0.0
    %224 = vmatpush1.msra.mxu0 0.0
    %225 = vmatprep.subr.mxu0 0.0
    %226 = vmatpush1.msra.mxu0 0.0
    %227 = vmatprep.subr.mxu0 0.0
    %228 = vmatpush1.msra.mxu0 0.0
    %229 = vmatprep.subr.mxu0 0.0
    %230 = vmatpush1.msra.mxu0 0.0
    %231 = vmatprep.subr.mxu0 0.0
    %232 = vmatpush1.msra.mxu0 0.0
    %233 = vmatprep.subr.mxu0 0.0
    %234 = vmatpush1.msra.mxu0 %v194
    %235 = vmatprep.subr.mxu0 0.0
    %236 = vmatpush2.msra.mxu0 0.0
    %237 = vmatprep.subr.mxu0 0.0
    %238 = vmatpush2.msra.mxu0 0.0
    %239 = vmatprep.subr.mxu0 0.0
    %240 = vmatpush2.msra.mxu0 0.0
    %241 = vmatprep.subr.mxu0 0.0
    %242 = vmatpush2.msra.mxu0 0.0
    %243 = vmatprep.subr.mxu0 0.0
    %244 = vmatpush2.msra.mxu0 0.0
    %245 = vmatprep.subr.mxu0 0.0
    %246 = vmatpush2.msra.mxu0 0.0
    %247 = vmatprep.subr.mxu0 0.0
    %248 = vmatpush2.msra.mxu0 0.0
    %249 = vmatprep.subr.mxu0 0.0
    %250 = vmatpush2.msra.mxu0 0.0
    %251 = vmatprep.subr.mxu0 0.0
    %252 = vmatpush2.msra.mxu0 0.0
    %253 = vmatprep.subr.mxu0 0.0
    %254 = vmatpush2.msra.mxu0 0.0
    %255 = vmatprep.subr.mxu0 0.0
    %256 = vmatpush2.msra.mxu0 0.0
    %257 = vmatprep.subr.mxu0 0.0
    %258 = vmatpush2.msra.mxu0 0.0
    %259 = vmatprep.subr.mxu0 0.0
    %260 = vmatpush2.msra.mxu0 0.0
    %261 = vmatprep.subr.mxu0 0.0
    %262 = vmatpush2.msra.mxu0 0.0
    %263 = vmatprep.subr.mxu0 0.0
    %264 = vmatpush2.msra.mxu0 0.0
    %265 = vmatprep.subr.mxu0 0.0
    %266 = vmatpush2.msra.mxu0 0.0
    %267 = vmatprep.mubr.f32.mxu0 0.0
    %268 = vmatmul.mubr.f32.gmra.mxu0 %v201
    %v269 = vpop.f32.mrf.mxu0
    %v270 = vadd.f32 %v199, %v269
    %v271 = vpop.f32.mrf.mxu0
    %272 = vdwg.mxu0
    %v273 = vld [vmem:[#allocation2 + $0x30] sm:$0xff]
    %v274 = vmul.f32 %v270, %v270
    %v275 = vsel %vm34, %v274, 0.0
    %276 = vadd.xlane.f32.xlu0 %v275
    %v277 = vpop.xlane.xlu0 %276
    %v279 = vsel %vm34, %v270, 0
    %v282 = vsel %vm34, %v273, 0
    %284 = vmatprep.subr.mxu0 0.0
    %285 = vmatpush1.xpose.msra.mxu0 0.0
    %286 = vmatprep.subr.mxu0 0.0
    %287 = vmatpush1.xpose.msra.mxu0 0.0
    %288 = vmatprep.subr.mxu0 0.0
    %289 = vmatpush1.xpose.msra.mxu0 0.0
    %290 = vmatprep.subr.mxu0 0.0
    %291 = vmatpush1.xpose.msra.mxu0 0.0
    %292 = vmatprep.subr.mxu0 0.0
    %293 = vmatpush1.xpose.msra.mxu0 0.0
    %294 = vmatprep.subr.mxu0 0.0
    %295 = vmatpush1.xpose.msra.mxu0 0.0
    %296 = vmatprep.subr.mxu0 0.0
    %297 = vmatpush1.xpose.msra.mxu0 0.0
    %298 = vmatprep.subr.mxu0 0.0
    %299 = vmatpush1.xpose.msra.mxu0 0.0
    %300 = vmatprep.subr.mxu0 0.0
    %301 = vmatpush1.xpose.msra.mxu0 0.0
    %302 = vmatprep.subr.mxu0 0.0
    %303 = vmatpush1.xpose.msra.mxu0 0.0
    %304 = vmatprep.subr.mxu0 0.0
    %305 = vmatpush1.xpose.msra.mxu0 0.0
    %306 = vmatprep.subr.mxu0 0.0
    %307 = vmatpush1.xpose.msra.mxu0 0.0
    %308 = vmatprep.subr.mxu0 0.0
    %309 = vmatpush1.xpose.msra.mxu0 0.0
    %310 = vmatprep.subr.mxu0 0.0
    %311 = vmatpush1.xpose.msra.mxu0 0.0
    %312 = vmatprep.subr.mxu0 0.0
    %313 = vmatpush1.xpose.msra.mxu0 0.0
    %314 = vmatprep.subr.mxu0 0.0
    %315 = vmatpush1.xpose.msra.mxu0 %v282
    %316 = vmatprep.subr.mxu0 0.0
    %317 = vmatpush2.xpose.msra.mxu0 0.0
    %318 = vmatprep.subr.mxu0 0.0
    %319 = vmatpush2.xpose.msra.mxu0 0.0
    %320 = vmatprep.subr.mxu0 0.0
    %321 = vmatpush2.xpose.msra.mxu0 0.0
    %322 = vmatprep.subr.mxu0 0.0
    %323 = vmatpush2.xpose.msra.mxu0 0.0
    %324 = vmatprep.subr.mxu0 0.0
    %325 = vmatpush2.xpose.msra.mxu0 0.0
    %326 = vmatprep.subr.mxu0 0.0
    %327 = vmatpush2.xpose.msra.mxu0 0.0
    %328 = vmatprep.subr.mxu0 0.0
    %329 = vmatpush2.xpose.msra.mxu0 0.0
    %330 = vmatprep.subr.mxu0 0.0
    %331 = vmatpush2.xpose.msra.mxu0 0.0
    %332 = vmatprep.subr.mxu0 0.0
    %333 = vmatpush2.xpose.msra.mxu0 0.0
    %334 = vmatprep.subr.mxu0 0.0
    %335 = vmatpush2.xpose.msra.mxu0 0.0
    %336 = vmatprep.subr.mxu0 0.0
    %337 = vmatpush2.xpose.msra.mxu0 0.0
    %338 = vmatprep.subr.mxu0 0.0
    %339 = vmatpush2.xpose.msra.mxu0 0.0
    %340 = vmatprep.subr.mxu0 0.0
    %341 = vmatpush2.xpose.msra.mxu0 0.0
    %342 = vmatprep.subr.mxu0 0.0
    %343 = vmatpush2.xpose.msra.mxu0 0.0
    %344 = vmatprep.subr.mxu0 0.0
    %345 = vmatpush2.xpose.msra.mxu0 0.0
    %346 = vmatprep.subr.mxu0 0.0
    %347 = vmatpush2.xpose.msra.mxu0 0.0
    %348 = vmatprep.mubr.f32.mxu0 0.0
    %349 = vmatmul.mubr.f32.gmra.mxu0 %v279
    %v350 = vpop.f32.mrf.mxu0
    %v351 = vadd.f32 0.0, %v350
    %v352 = vpop.f32.mrf.mxu0
    %353 = vdwg.mxu0
    %v354 = vld [vmem:[#allocation2 + $0x38] sm:$0x1]
    %v355 = vlaneseq
    %v356 = vshrl.u32 %v355, 7
    %v357 = vsub.s32 0, %v356
    %v358 = vrot.slane %v354, %v357
    %v359 = vadd.f32 %v277, %v358
    %v360 = vmul.f32 %v351, 2.0
    %v361 = vsub.f32 %v359, %v360
    %v362 = vlaneseq
    %v363 = vand.u32 %v362, 127
    %v364 = vsel %vm34, %v361, inf
    %365 = vmin.xlane.f32.xlu0 %v364
    %v366 = vpop.xlane.xlu0 %365
    %vm367 = vcmp.eq.f32.partialorder %v361, %v366
    %v368 = vsel %vm367, %v363, 8
    %v369 = vsel %vm34, %v368, 2147483647
    %v370 = vand.u32 %v369, 65535
    %v371 = vshra.s32 %v369, 16
    %v372 = vcvt.s32.f32 %v370
    %v373 = vcvt.s32.f32 %v371
    %374 = vmin.xlane.f32.xlu0 %v373
    %v375 = vpop.xlane.xlu0 %374
    %vm376 = vcmp.eq.f32.partialorder %v373, %v375
    %v377 = vsel %vm376, %v372, inf
    %378 = vmin.xlane.f32.xlu0 %v377
    %v379 = vpop.xlane.xlu0 %378
    %v380 = vcvt.f32.s32 %v379
    %v381 = vcvt.f32.s32 %v375
    %v382 = vshll.u32 %v381, 16
    %v383 = vadd.s32 %v382, %v380
    %vm384 = vcmp.eq.s32.totalorder %v363, %v383
    %v385 = vsel %vm384, 1, 0
    %v386 = vcvt.s32.f32 %v385
    %v388 = vsel %vm34, %v386, 0
    %390 = vmatprep.subr.mxu0 0.0
    %391 = vmatpush1.msra.mxu0 0.0
    %392 = vmatprep.subr.mxu0 0.0
    %393 = vmatpush1.msra.mxu0 0.0
    %394 = vmatprep.subr.mxu0 0.0
    %395 = vmatpush1.msra.mxu0 0.0
    %396 = vmatprep.subr.mxu0 0.0
    %397 = vmatpush1.msra.mxu0 0.0
    %398 = vmatprep.subr.mxu0 0.0
    %399 = vmatpush1.msra.mxu0 0.0
    %400 = vmatprep.subr.mxu0 0.0
    %401 = vmatpush1.msra.mxu0 0.0
    %402 = vmatprep.subr.mxu0 0.0
    %403 = vmatpush1.msra.mxu0 0.0
    %404 = vmatprep.subr.mxu0 0.0
    %405 = vmatpush1.msra.mxu0 0.0
    %406 = vmatprep.subr.mxu0 0.0
    %407 = vmatpush1.msra.mxu0 0.0
    %408 = vmatprep.subr.mxu0 0.0
    %409 = vmatpush1.msra.mxu0 0.0
    %410 = vmatprep.subr.mxu0 0.0
    %411 = vmatpush1.msra.mxu0 0.0
    %412 = vmatprep.subr.mxu0 0.0
    %413 = vmatpush1.msra.mxu0 0.0
    %414 = vmatprep.subr.mxu0 0.0
    %415 = vmatpush1.msra.mxu0 0.0
    %416 = vmatprep.subr.mxu0 0.0
    %417 = vmatpush1.msra.mxu0 0.0
    %418 = vmatprep.subr.mxu0 0.0
    %419 = vmatpush1.msra.mxu0 0.0
    %420 = vmatprep.subr.mxu0 0.0
    %421 = vmatpush1.msra.mxu0 %v273
    %422 = vmatprep.subr.mxu0 0.0
    %423 = vmatpush2.msra.mxu0 0.0
    %424 = vmatprep.subr.mxu0 0.0
    %425 = vmatpush2.msra.mxu0 0.0
    %426 = vmatprep.subr.mxu0 0.0
    %427 = vmatpush2.msra.mxu0 0.0
    %428 = vmatprep.subr.mxu0 0.0
    %429 = vmatpush2.msra.mxu0 0.0
    %430 = vmatprep.subr.mxu0 0.0
    %431 = vmatpush2.msra.mxu0 0.0
    %432 = vmatprep.subr.mxu0 0.0
    %433 = vmatpush2.msra.mxu0 0.0
    %434 = vmatprep.subr.mxu0 0.0
    %435 = vmatpush2.msra.mxu0 0.0
    %436 = vmatprep.subr.mxu0 0.0
    %437 = vmatpush2.msra.mxu0 0.0
    %438 = vmatprep.subr.mxu0 0.0
    %439 = vmatpush2.msra.mxu0 0.0
    %440 = vmatprep.subr.mxu0 0.0
    %441 = vmatpush2.msra.mxu0 0.0
    %442 = vmatprep.subr.mxu0 0.0
    %443 = vmatpush2.msra.mxu0 0.0
    %444 = vmatprep.subr.mxu0 0.0
    %445 = vmatpush2.msra.mxu0 0.0
    %446 = vmatprep.subr.mxu0 0.0
    %447 = vmatpush2.msra.mxu0 0.0
    %448 = vmatprep.subr.mxu0 0.0
    %449 = vmatpush2.msra.mxu0 0.0
    %450 = vmatprep.subr.mxu0 0.0
    %451 = vmatpush2.msra.mxu0 0.0
    %452 = vmatprep.subr.mxu0 0.0
    %453 = vmatpush2.msra.mxu0 0.0
    %454 = vmatprep.mubr.f32.mxu0 0.0
    %455 = vmatmul.mubr.f32.gmra.mxu0 %v388
    %v456 = vpop.f32.mrf.mxu0
    %v457 = vadd.f32 0.0, %v456
    %v458 = vpop.f32.mrf.mxu0
    %459 = vdwg.mxu0
    %v460 = vld [vmem:[#allocation2 + $0x40] sm:$0xff]
    %v461 = vld [vmem:[#allocation2 + $0x48] sm:$0x1]
    %v462 = vlaneseq
    %v463 = vshrl.u32 %v462, 7
    %v464 = vsub.s32 0, %v463
    %v465 = vrot.slane %v461, %v464
    %v467 = vsel %vm34, %v457, 0
    %469 = vmatprep.subr.mxu0 0.0
    %470 = vmatpush1.msra.mxu0 0.0
    %471 = vmatprep.subr.mxu0 0.0
    %472 = vmatpush1.msra.mxu0 0.0
    %473 = vmatprep.subr.mxu0 0.0
    %474 = vmatpush1.msra.mxu0 0.0
    %475 = vmatprep.subr.mxu0 0.0
    %476 = vmatpush1.msra.mxu0 0.0
    %477 = vmatprep.subr.mxu0 0.0
    %478 = vmatpush1.msra.mxu0 0.0
    %479 = vmatprep.subr.mxu0 0.0
    %480 = vmatpush1.msra.mxu0 0.0
    %481 = vmatprep.subr.mxu0 0.0
    %482 = vmatpush1.msra.mxu0 0.0
    %483 = vmatprep.subr.mxu0 0.0
    %484 = vmatpush1.msra.mxu0 0.0
    %485 = vmatprep.subr.mxu0 0.0
    %486 = vmatpush1.msra.mxu0 0.0
    %487 = vmatprep.subr.mxu0 0.0
    %488 = vmatpush1.msra.mxu0 0.0
    %489 = vmatprep.subr.mxu0 0.0
    %490 = vmatpush1.msra.mxu0 0.0
    %491 = vmatprep.subr.mxu0 0.0
    %492 = vmatpush1.msra.mxu0 0.0
    %493 = vmatprep.subr.mxu0 0.0
    %494 = vmatpush1.msra.mxu0 0.0
    %495 = vmatprep.subr.mxu0 0.0
    %496 = vmatpush1.msra.mxu0 0.0
    %497 = vmatprep.subr.mxu0 0.0
    %498 = vmatpush1.msra.mxu0 0.0
    %499 = vmatprep.subr.mxu0 0.0
    %500 = vmatpush1.msra.mxu0 %v460
    %501 = vmatprep.subr.mxu0 0.0
    %502 = vmatpush2.msra.mxu0 0.0
    %503 = vmatprep.subr.mxu0 0.0
    %504 = vmatpush2.msra.mxu0 0.0
    %505 = vmatprep.subr.mxu0 0.0
    %506 = vmatpush2.msra.mxu0 0.0
    %507 = vmatprep.subr.mxu0 0.0
    %508 = vmatpush2.msra.mxu0 0.0
    %509 = vmatprep.subr.mxu0 0.0
    %510 = vmatpush2.msra.mxu0 0.0
    %511 = vmatprep.subr.mxu0 0.0
    %512 = vmatpush2.msra.mxu0 0.0
    %513 = vmatprep.subr.mxu0 0.0
    %514 = vmatpush2.msra.mxu0 0.0
    %515 = vmatprep.subr.mxu0 0.0
    %516 = vmatpush2.msra.mxu0 0.0
    %517 = vmatprep.subr.mxu0 0.0
    %518 = vmatpush2.msra.mxu0 0.0
    %519 = vmatprep.subr.mxu0 0.0
    %520 = vmatpush2.msra.mxu0 0.0
    %521 = vmatprep.subr.mxu0 0.0
    %522 = vmatpush2.msra.mxu0 0.0
    %523 = vmatprep.subr.mxu0 0.0
    %524 = vmatpush2.msra.mxu0 0.0
    %525 = vmatprep.subr.mxu0 0.0
    %526 = vmatpush2.msra.mxu0 0.0
    %527 = vmatprep.subr.mxu0 0.0
    %528 = vmatpush2.msra.mxu0 0.0
    %529 = vmatprep.subr.mxu0 0.0
    %530 = vmatpush2.msra.mxu0 0.0
    %531 = vmatprep.subr.mxu0 0.0
    %532 = vmatpush2.msra.mxu0 0.0
    %533 = vmatprep.mubr.f32.mxu0 0.0
    %534 = vmatmul.mubr.f32.gmra.mxu0 %v467
    %v535 = vpop.f32.mrf.mxu0
    %v536 = vadd.f32 %v465, %v535
    %v537 = vpop.f32.mrf.mxu0
    %538 = vdwg.mxu0
    %v539 = vtanh.pop %v536
    %v540 = vld [vmem:[#allocation2 + $0x50] sm:$0xff]
    %v541 = vld [vmem:[#allocation2 + $0x58] sm:$0xff]
    %v542 = vld [vmem:[#allocation2 + $0x60] sm:$0xff]
    %v543 = vld [vmem:[#allocation2 + $0x68] sm:$0xff]
    %v544 = vld [vmem:[#allocation2 + $0x70] sm:$0x1]
    %v545 = vlaneseq
    %v546 = vshrl.u32 %v545, 7
    %v547 = vsub.s32 0, %v546
    %v548 = vrot.slane %v544, %v547
    %vm549 = vcmask 261120
    %v551 = vsel %vm549, %v539, 0
    %553 = vmatprep.subr.mxu0 0.0
    %554 = vmatpush1.msra.mxu0 0.0
    %555 = vmatprep.subr.mxu0 0.0
    %556 = vmatpush1.msra.mxu0 0.0
    %557 = vmatprep.subr.mxu0 0.0
    %558 = vmatpush1.msra.mxu0 0.0
    %559 = vmatprep.subr.mxu0 0.0
    %560 = vmatpush1.msra.mxu0 0.0
    %561 = vmatprep.subr.mxu0 0.0
    %562 = vmatpush1.msra.mxu0 0.0
    %563 = vmatprep.subr.mxu0 0.0
    %564 = vmatpush1.msra.mxu0 0.0
    %565 = vmatprep.subr.mxu0 0.0
    %566 = vmatpush1.msra.mxu0 0.0
    %567 = vmatprep.subr.mxu0 0.0
    %568 = vmatpush1.msra.mxu0 0.0
    %569 = vmatprep.subr.mxu0 0.0
    %570 = vmatpush1.msra.mxu0 0.0
    %571 = vmatprep.subr.mxu0 0.0
    %572 = vmatpush1.msra.mxu0 0.0
    %573 = vmatprep.subr.mxu0 0.0
    %574 = vmatpush1.msra.mxu0 0.0
    %575 = vmatprep.subr.mxu0 0.0
    %576 = vmatpush1.msra.mxu0 0.0
    %577 = vmatprep.subr.mxu0 0.0
    %578 = vmatpush1.msra.mxu0 %v543
    %579 = vmatprep.subr.mxu0 0.0
    %580 = vmatpush1.msra.mxu0 %v542
    %581 = vmatprep.subr.mxu0 0.0
    %582 = vmatpush1.msra.mxu0 %v541
    %583 = vmatprep.subr.mxu0 0.0
    %584 = vmatpush1.msra.mxu0 %v540
    %585 = vmatprep.subr.mxu0 0.0
    %586 = vmatpush2.msra.mxu0 0.0
    %587 = vmatprep.subr.mxu0 0.0
    %588 = vmatpush2.msra.mxu0 0.0
    %589 = vmatprep.subr.mxu0 0.0
    %590 = vmatpush2.msra.mxu0 0.0
    %591 = vmatprep.subr.mxu0 0.0
    %592 = vmatpush2.msra.mxu0 0.0
    %593 = vmatprep.subr.mxu0 0.0
    %594 = vmatpush2.msra.mxu0 0.0
    %595 = vmatprep.subr.mxu0 0.0
    %596 = vmatpush2.msra.mxu0 0.0
    %597 = vmatprep.subr.mxu0 0.0
    %598 = vmatpush2.msra.mxu0 0.0
    %599 = vmatprep.subr.mxu0 0.0
    %600 = vmatpush2.msra.mxu0 0.0
    %601 = vmatprep.subr.mxu0 0.0
    %602 = vmatpush2.msra.mxu0 0.0
    %603 = vmatprep.subr.mxu0 0.0
    %604 = vmatpush2.msra.mxu0 0.0
    %605 = vmatprep.subr.mxu0 0.0
    %606 = vmatpush2.msra.mxu0 0.0
    %607 = vmatprep.subr.mxu0 0.0
    %608 = vmatpush2.msra.mxu0 0.0
    %609 = vmatprep.subr.mxu0 0.0
    %610 = vmatpush2.msra.mxu0 0.0
    %611 = vmatprep.subr.mxu0 0.0
    %612 = vmatpush2.msra.mxu0 0.0
    %613 = vmatprep.subr.mxu0 0.0
    %614 = vmatpush2.msra.mxu0 0.0
    %615 = vmatprep.subr.mxu0 0.0
    %616 = vmatpush2.msra.mxu0 0.0
    %617 = vmatprep.mubr.f32.mxu0 0.0
    %618 = vmatmul.mubr.f32.gmra.mxu0 %v551
    %v619 = vpop.f32.mrf.mxu0
    %v620 = vadd.f32 %v548, %v619
    %v621 = vpop.f32.mrf.mxu0
    %622 = vdwg.mxu0
    %v623 = vtanh.pop %v620
    %v624 = vld [vmem:[#allocation2 + $0x78] sm:$0xff]
    %v625 = vld [vmem:[#allocation2 + $0x80] sm:$0xff]
    %v626 = vld [vmem:[#allocation2 + $0x88] sm:$0xff]
    %v627 = vld [vmem:[#allocation2 + $0x90] sm:$0xff]
    %v628 = vld [vmem:[#allocation2 + $0x98] sm:$0x1]
    %v629 = vlaneseq
    %v630 = vshrl.u32 %v629, 7
    %v631 = vsub.s32 0, %v630
    %v632 = vrot.slane %v628, %v631
    %v634 = vsel %vm549, %v623, 0
    %636 = vmatprep.subr.mxu0 0.0
    %637 = vmatpush1.msra.mxu0 0.0
    %638 = vmatprep.subr.mxu0 0.0
    %639 = vmatpush1.msra.mxu0 0.0
    %640 = vmatprep.subr.mxu0 0.0
    %641 = vmatpush1.msra.mxu0 0.0
    %642 = vmatprep.subr.mxu0 0.0
    %643 = vmatpush1.msra.mxu0 0.0
    %644 = vmatprep.subr.mxu0 0.0
    %645 = vmatpush1.msra.mxu0 0.0
    %646 = vmatprep.subr.mxu0 0.0
    %647 = vmatpush1.msra.mxu0 0.0
    %648 = vmatprep.subr.mxu0 0.0
    %649 = vmatpush1.msra.mxu0 0.0
    %650 = vmatprep.subr.mxu0 0.0
    %651 = vmatpush1.msra.mxu0 0.0
    %652 = vmatprep.subr.mxu0 0.0
    %653 = vmatpush1.msra.mxu0 0.0
    %654 = vmatprep.subr.mxu0 0.0
    %655 = vmatpush1.msra.mxu0 0.0
    %656 = vmatprep.subr.mxu0 0.0
    %657 = vmatpush1.msra.mxu0 0.0
    %658 = vmatprep.subr.mxu0 0.0
    %659 = vmatpush1.msra.mxu0 0.0
    %660 = vmatprep.subr.mxu0 0.0
    %661 = vmatpush1.msra.mxu0 %v627
    %662 = vmatprep.subr.mxu0 0.0
    %663 = vmatpush1.msra.mxu0 %v626
    %664 = vmatprep.subr.mxu0 0.0
    %665 = vmatpush1.msra.mxu0 %v625
    %666 = vmatprep.subr.mxu0 0.0
    %667 = vmatpush1.msra.mxu0 %v624
    %668 = vmatprep.subr.mxu0 0.0
    %669 = vmatpush2.msra.mxu0 0.0
    %670 = vmatprep.subr.mxu0 0.0
    %671 = vmatpush2.msra.mxu0 0.0
    %672 = vmatprep.subr.mxu0 0.0
    %673 = vmatpush2.msra.mxu0 0.0
    %674 = vmatprep.subr.mxu0 0.0
    %675 = vmatpush2.msra.mxu0 0.0
    %676 = vmatprep.subr.mxu0 0.0
    %677 = vmatpush2.msra.mxu0 0.0
    %678 = vmatprep.subr.mxu0 0.0
    %679 = vmatpush2.msra.mxu0 0.0
    %680 = vmatprep.subr.mxu0 0.0
    %681 = vmatpush2.msra.mxu0 0.0
    %682 = vmatprep.subr.mxu0 0.0
    %683 = vmatpush2.msra.mxu0 0.0
    %684 = vmatprep.subr.mxu0 0.0
    %685 = vmatpush2.msra.mxu0 0.0
    %686 = vmatprep.subr.mxu0 0.0
    %687 = vmatpush2.msra.mxu0 0.0
    %688 = vmatprep.subr.mxu0 0.0
    %689 = vmatpush2.msra.mxu0 0.0
    %690 = vmatprep.subr.mxu0 0.0
    %691 = vmatpush2.msra.mxu0 0.0
    %692 = vmatprep.subr.mxu0 0.0
    %693 = vmatpush2.msra.mxu0 0.0
    %694 = vmatprep.subr.mxu0 0.0
    %695 = vmatpush2.msra.mxu0 0.0
    %696 = vmatprep.subr.mxu0 0.0
    %697 = vmatpush2.msra.mxu0 0.0
    %698 = vmatprep.subr.mxu0 0.0
    %699 = vmatpush2.msra.mxu0 0.0
    %700 = vmatprep.mubr.f32.mxu0 0.0
    %701 = vmatmul.mubr.f32.gmra.mxu0 %v634
    %v702 = vpop.f32.mrf.mxu0
    %v703 = vadd.f32 %v632, %v702
    %v704 = vpop.f32.mrf.mxu0
    %705 = vdwg.mxu0
    %v706 = vsub.f32 %v26, %v703
    %v707 = vmul.f32 %v706, %v706
    %v708 = vsel %vm34, %v707, 0.0
    %709 = vadd.xlane.f32.xlu0 %v708
    %v710 = vpop.xlane.xlu0 %709
    %v711 = vrot.slane %v710, 4
    %v712 = vadd.f32 %v710, %v711
    %v713 = vrot.slane %v712, 2
    %v714 = vadd.f32 %v712, %v713
    %v715 = vrot.slane %v714, 1
    %v716 = vadd.f32 %v714, %v715
    %v717 = vrcp.pop 64.0
    %v718 = vmul.f32 %v716, %v717
    %v719 = vsub.f32 %v270, %v457
    %v720 = vmul.f32 %v719, %v719
    %v721 = vsel %vm34, %v720, 0.0
    %722 = vadd.xlane.f32.xlu0 %v721
    %v723 = vpop.xlane.xlu0 %722
    %v724 = vrot.slane %v723, 4
    %v725 = vadd.f32 %v723, %v724
    %v726 = vrot.slane %v725, 2
    %v727 = vadd.f32 %v725, %v726
    %v728 = vrot.slane %v727, 1
    %v729 = vadd.f32 %v727, %v728
    %v730 = vmul.f32 %v729, %v717
    %v731 = vadd.f32 %v718, %v730
    %v732 = vadd.f32 %v731, %v730
    %v733 = vld [vmem:[#allocation2 + $0xa0] sm:$0xff]
    %v734 = vld [vmem:[#allocation2 + $0xa8] sm:$0xff]
    %v736 = vsel %vm34, %v361, 0
    %738 = vmatprep.subr.mxu0 0.0
    %739 = vmatpush1.msra.mxu0 0.0
    %740 = vmatprep.subr.mxu0 0.0
    %741 = vmatpush1.msra.mxu0 0.0
    %742 = vmatprep.subr.mxu0 0.0
    %743 = vmatpush1.msra.mxu0 0.0
    %744 = vmatprep.subr.mxu0 0.0
    %745 = vmatpush1.msra.mxu0 0.0
    %746 = vmatprep.subr.mxu0 0.0
    %747 = vmatpush1.msra.mxu0 0.0
    %748 = vmatprep.subr.mxu0 0.0
    %749 = vmatpush1.msra.mxu0 0.0
    %750 = vmatprep.subr.mxu0 0.0
    %751 = vmatpush1.msra.mxu0 0.0
    %752 = vmatprep.subr.mxu0 0.0
    %753 = vmatpush1.msra.mxu0 0.0
    %754 = vmatprep.subr.mxu0 0.0
    %755 = vmatpush1.msra.mxu0 0.0
    %756 = vmatprep.subr.mxu0 0.0
    %757 = vmatpush1.msra.mxu0 0.0
    %758 = vmatprep.subr.mxu0 0.0
    %759 = vmatpush1.msra.mxu0 0.0
    %760 = vmatprep.subr.mxu0 0.0
    %761 = vmatpush1.msra.mxu0 0.0
    %762 = vmatprep.subr.mxu0 0.0
    %763 = vmatpush1.msra.mxu0 0.0
    %764 = vmatprep.subr.mxu0 0.0
    %765 = vmatpush1.msra.mxu0 0.0
    %766 = vmatprep.subr.mxu0 0.0
    %767 = vmatpush1.msra.mxu0 0.0
    %768 = vmatprep.subr.mxu0 0.0
    %769 = vmatpush1.msra.mxu0 %v734
    %770 = vmatprep.subr.mxu0 0.0
    %771 = vmatpush2.msra.mxu0 0.0
    %772 = vmatprep.subr.mxu0 0.0
    %773 = vmatpush2.msra.mxu0 0.0
    %774 = vmatprep.subr.mxu0 0.0
    %775 = vmatpush2.msra.mxu0 0.0
    %776 = vmatprep.subr.mxu0 0.0
    %777 = vmatpush2.msra.mxu0 0.0
    %778 = vmatprep.subr.mxu0 0.0
    %779 = vmatpush2.msra.mxu0 0.0
    %780 = vmatprep.subr.mxu0 0.0
    %781 = vmatpush2.msra.mxu0 0.0
    %782 = vmatprep.subr.mxu0 0.0
    %783 = vmatpush2.msra.mxu0 0.0
    %784 = vmatprep.subr.mxu0 0.0
    %785 = vmatpush2.msra.mxu0 0.0
    %786 = vmatprep.subr.mxu0 0.0
    %787 = vmatpush2.msra.mxu0 0.0
    %788 = vmatprep.subr.mxu0 0.0
    %789 = vmatpush2.msra.mxu0 0.0
    %790 = vmatprep.subr.mxu0 0.0
    %791 = vmatpush2.msra.mxu0 0.0
    %792 = vmatprep.subr.mxu0 0.0
    %793 = vmatpush2.msra.mxu0 0.0
    %794 = vmatprep.subr.mxu0 0.0
    %795 = vmatpush2.msra.mxu0 0.0
    %796 = vmatprep.subr.mxu0 0.0
    %797 = vmatpush2.msra.mxu0 0.0
    %798 = vmatprep.subr.mxu0 0.0
    %799 = vmatpush2.msra.mxu0 0.0
    %800 = vmatprep.subr.mxu0 0.0
    %801 = vmatpush2.msra.mxu0 0.0
    %802 = vmatprep.mubr.f32.mxu0 0.0
    %803 = vmatmul.mubr.f32.gmra.mxu0 %v736
    %v804 = vpop.f32.mrf.mxu0
    %v805 = vadd.f32 0.0, %v804
    %v806 = vpop.f32.mrf.mxu0
    %807 = vdwg.mxu0
    %v809 = vsel %vm34, %v25, 0
    %811 = vmatprep.subr.mxu0 0.0
    %812 = vmatpush1.msra.mxu0 0.0
    %813 = vmatprep.subr.mxu0 0.0
    %814 = vmatpush1.msra.mxu0 0.0
    %815 = vmatprep.subr.mxu0 0.0
    %816 = vmatpush1.msra.mxu0 0.0
    %817 = vmatprep.subr.mxu0 0.0
    %818 = vmatpush1.msra.mxu0 0.0
    %819 = vmatprep.subr.mxu0 0.0
    %820 = vmatpush1.msra.mxu0 0.0
    %821 = vmatprep.subr.mxu0 0.0
    %822 = vmatpush1.msra.mxu0 0.0
    %823 = vmatprep.subr.mxu0 0.0
    %824 = vmatpush1.msra.mxu0 0.0
    %825 = vmatprep.subr.mxu0 0.0
    %826 = vmatpush1.msra.mxu0 0.0
    %827 = vmatprep.subr.mxu0 0.0
    %828 = vmatpush1.msra.mxu0 0.0
    %829 = vmatprep.subr.mxu0 0.0
    %830 = vmatpush1.msra.mxu0 0.0
    %831 = vmatprep.subr.mxu0 0.0
    %832 = vmatpush1.msra.mxu0 0.0
    %833 = vmatprep.subr.mxu0 0.0
    %834 = vmatpush1.msra.mxu0 0.0
    %835 = vmatprep.subr.mxu0 0.0
    %836 = vmatpush1.msra.mxu0 0.0
    %837 = vmatprep.subr.mxu0 0.0
    %838 = vmatpush1.msra.mxu0 0.0
    %839 = vmatprep.subr.mxu0 0.0
    %840 = vmatpush1.msra.mxu0 0.0
    %841 = vmatprep.subr.mxu0 0.0
    %842 = vmatpush1.msra.mxu0 %v733
    %843 = vmatprep.subr.mxu0 0.0
    %844 = vmatpush2.msra.mxu0 0.0
    %845 = vmatprep.subr.mxu0 0.0
    %846 = vmatpush2.msra.mxu0 0.0
    %847 = vmatprep.subr.mxu0 0.0
    %848 = vmatpush2.msra.mxu0 0.0
    %849 = vmatprep.subr.mxu0 0.0
    %850 = vmatpush2.msra.mxu0 0.0
    %851 = vmatprep.subr.mxu0 0.0
    %852 = vmatpush2.msra.mxu0 0.0
    %853 = vmatprep.subr.mxu0 0.0
    %854 = vmatpush2.msra.mxu0 0.0
    %855 = vmatprep.subr.mxu0 0.0
    %856 = vmatpush2.msra.mxu0 0.0
    %857 = vmatprep.subr.mxu0 0.0
    %858 = vmatpush2.msra.mxu0 0.0
    %859 = vmatprep.subr.mxu0 0.0
    %860 = vmatpush2.msra.mxu0 0.0
    %861 = vmatprep.subr.mxu0 0.0
    %862 = vmatpush2.msra.mxu0 0.0
    %863 = vmatprep.subr.mxu0 0.0
    %864 = vmatpush2.msra.mxu0 0.0
    %865 = vmatprep.subr.mxu0 0.0
    %866 = vmatpush2.msra.mxu0 0.0
    %867 = vmatprep.subr.mxu0 0.0
    %868 = vmatpush2.msra.mxu0 0.0
    %869 = vmatprep.subr.mxu0 0.0
    %870 = vmatpush2.msra.mxu0 0.0
    %871 = vmatprep.subr.mxu0 0.0
    %872 = vmatpush2.msra.mxu0 0.0
    %873 = vmatprep.subr.mxu0 0.0
    %874 = vmatpush2.msra.mxu0 0.0
    %875 = vmatprep.mubr.f32.mxu0 0.0
    %876 = vmatmul.mubr.f32.gmra.mxu0 %v809
    %v877 = vpop.f32.mrf.mxu0
    %v878 = vadd.f32 %v805, %v877
    %v879 = vpop.f32.mrf.mxu0
    %880 = vdwg.mxu0
    %v881 = vld [vmem:[#allocation2 + $0xb0] sm:$0x1]
    %v882 = vlaneseq
    %v883 = vshrl.u32 %v882, 7
    %v884 = vsub.s32 0, %v883
    %v885 = vrot.slane %v881, %v884
    %v886 = vadd.f32 %v878, %v885
    %v887 = vtanh.pop %v886
    %v888 = vld [vmem:[#allocation2 + $0xb8] sm:$0xff]
    %v889 = vld [vmem:[#allocation2 + $0xc0] sm:$0xff]
    %v890 = vld [vmem:[#allocation2 + $0xc8] sm:$0xff]
    %v891 = vld [vmem:[#allocation2 + $0xd0] sm:$0xff]
    %v892 = vld [vmem:[#allocation2 + $0xd8] sm:$0x1]
    %v893 = vlaneseq
    %v894 = vshrl.u32 %v893, 7
    %v895 = vsub.s32 0, %v894
    %v896 = vrot.slane %v892, %v895
    %v898 = vsel %vm549, %v887, 0
    %900 = vmatprep.subr.mxu0 0.0
    %901 = vmatpush1.msra.mxu0 0.0
    %902 = vmatprep.subr.mxu0 0.0
    %903 = vmatpush1.msra.mxu0 0.0
    %904 = vmatprep.subr.mxu0 0.0
    %905 = vmatpush1.msra.mxu0 0.0
    %906 = vmatprep.subr.mxu0 0.0
    %907 = vmatpush1.msra.mxu0 0.0
    %908 = vmatprep.subr.mxu0 0.0
    %909 = vmatpush1.msra.mxu0 0.0
    %910 = vmatprep.subr.mxu0 0.0
    %911 = vmatpush1.msra.mxu0 0.0
    %912 = vmatprep.subr.mxu0 0.0
    %913 = vmatpush1.msra.mxu0 0.0
    %914 = vmatprep.subr.mxu0 0.0
    %915 = vmatpush1.msra.mxu0 0.0
    %916 = vmatprep.subr.mxu0 0.0
    %917 = vmatpush1.msra.mxu0 0.0
    %918 = vmatprep.subr.mxu0 0.0
    %919 = vmatpush1.msra.mxu0 0.0
    %920 = vmatprep.subr.mxu0 0.0
    %921 = vmatpush1.msra.mxu0 0.0
    %922 = vmatprep.subr.mxu0 0.0
    %923 = vmatpush1.msra.mxu0 0.0
    %924 = vmatprep.subr.mxu0 0.0
    %925 = vmatpush1.msra.mxu0 %v891
    %926 = vmatprep.subr.mxu0 0.0
    %927 = vmatpush1.msra.mxu0 %v890
    %928 = vmatprep.subr.mxu0 0.0
    %929 = vmatpush1.msra.mxu0 %v889
    %930 = vmatprep.subr.mxu0 0.0
    %931 = vmatpush1.msra.mxu0 %v888
    %932 = vmatprep.subr.mxu0 0.0
    %933 = vmatpush2.msra.mxu0 0.0
    %934 = vmatprep.subr.mxu0 0.0
    %935 = vmatpush2.msra.mxu0 0.0
    %936 = vmatprep.subr.mxu0 0.0
    %937 = vmatpush2.msra.mxu0 0.0
    %938 = vmatprep.subr.mxu0 0.0
    %939 = vmatpush2.msra.mxu0 0.0
    %940 = vmatprep.subr.mxu0 0.0
    %941 = vmatpush2.msra.mxu0 0.0
    %942 = vmatprep.subr.mxu0 0.0
    %943 = vmatpush2.msra.mxu0 0.0
    %944 = vmatprep.subr.mxu0 0.0
    %945 = vmatpush2.msra.mxu0 0.0
    %946 = vmatprep.subr.mxu0 0.0
    %947 = vmatpush2.msra.mxu0 0.0
    %948 = vmatprep.subr.mxu0 0.0
    %949 = vmatpush2.msra.mxu0 0.0
    %950 = vmatprep.subr.mxu0 0.0
    %951 = vmatpush2.msra.mxu0 0.0
    %952 = vmatprep.subr.mxu0 0.0
    %953 = vmatpush2.msra.mxu0 0.0
    %954 = vmatprep.subr.mxu0 0.0
    %955 = vmatpush2.msra.mxu0 0.0
    %956 = vmatprep.subr.mxu0 0.0
    %957 = vmatpush2.msra.mxu0 0.0
    %958 = vmatprep.subr.mxu0 0.0
    %959 = vmatpush2.msra.mxu0 0.0
    %960 = vmatprep.subr.mxu0 0.0
    %961 = vmatpush2.msra.mxu0 0.0
    %962 = vmatprep.subr.mxu0 0.0
    %963 = vmatpush2.msra.mxu0 0.0
    %964 = vmatprep.mubr.f32.mxu0 0.0
    %965 = vmatmul.mubr.f32.gmra.mxu0 %v898
    %v966 = vpop.f32.mrf.mxu0
    %v967 = vadd.f32 %v896, %v966
    %v968 = vpop.f32.mrf.mxu0
    %969 = vdwg.mxu0
    %v970 = vsub.f32 %v27, %v967
    %v971 = vmul.f32 %v970, %v970
    %v972 = vsub.f32 0.0, %v971
    %v973 = vld [vmem:[#allocation2 + $0xe0] sm:$0x1]
    %v974 = vlaneseq
    %v975 = vshrl.u32 %v974, 7
    %v976 = vsub.s32 0, %v975
    %v977 = vrot.slane %v973, %v976
    %v978 = vmul.f32 %v972, %v977
    %v979 = vld [vmem:[#allocation2 + $0xe8] sm:$0x1]
    %v980 = vlaneseq
    %v981 = vshrl.u32 %v980, 7
    %v982 = vsub.s32 0, %v981
    %v983 = vrot.slane %v979, %v982
    %v984 = vadd.f32 %v978, %v983
    %v985 = vmul.f32 %v984, 1.442695
    %v986 = vpow.pop %v985
    %v987 = vadd.f32 %v986, 0.1
    %v988 = vrcp.pop %v987
    %v989 = vmul.f32 1.0, %v988
    %v990 = vsel %vm115, %v989, 0.0
    %991 = vadd.xlane.f32.xlu0 %v990
    %v992 = vpop.xlane.xlu0 %991
    %v993 = vmul.f32 %v992, %v732
    %vm994 = vcmp.eq.s32.totalorder %v363, 0
    %v995 = vsel %vm994, %v993, 0.0
    %vm996 = vcmp.eq.s32.totalorder %v363, 1
    %v997 = vsel %vm996, %v992, %v995
    %vm998 = vcmp.eq.s32.totalorder %v363, 2
    %v999 = vcvt.s32.f32 %v383
    %v1000 = vsel %vm998, %v999, %v997
    %vm1001 = vcmp.eq.s32.totalorder %v363, 3
    %v1002 = vsel %vm1001, %v732, %v1000
    %1003 = vst [vmem:[%s2] sm:$0xff] %v1002
    // Predicated region
    $region14: #{memo_forward.1} parent=1 // pred_check
      _
    $region15: #{memo_forward.1} parent=1 // pred_check_branch
      %1005 = sbr.rel (0) target = $region17
    $region16: #{memo_forward.1} parent=1 // pred_region
      _
    $region17: #{memo_forward.1} parent=1 // pred_fallthru
      _
    // Predicated region
    $region18: #{memo_forward.1} parent=1 // pred_check
      _
    $region19: #{memo_forward.1} parent=1 // pred_check_branch
      %1007 = sbr.rel (0) target = $region21
    $region20: #{memo_forward.1} parent=1 // pred_region
      _
    $region21: #{memo_forward.1} parent=1 // pred_fallthru
      _
    %1008 = vsyncpa [#allocation3], 1

</llo_original>
